<compile_context>
chip_gen: v7x
topology: tpu7x:2x2x1
jax: 0.10.0
libtpu: 0.0.40
codegen_flags: <defaults>
</compile_context>

<pallas_src>
import functools
from dataclasses import dataclass

import jax
import jax.numpy as jnp
from jax.experimental import pallas as pl
from jax.experimental.pallas import tpu as pltpu


# Safe scoped-VMEM ceiling on every generation (v7x has 64 MiB physical / TC;
# v5e/v6e can go higher if you want bigger tiles).
_VMEM_LIMIT_BYTES = 64 * 1024 * 1024


# ---------------------------------------------------------------------------
# Config
# ---------------------------------------------------------------------------
@dataclass
class LlamaConfig:
    vocab_size: int = 32000
    hidden_size: int = 4096
    intermediate_size: int = 14336
    num_hidden_layers: int = 32
    num_attention_heads: int = 32
    num_key_value_heads: int = 8
    max_position_embeddings: int = 4096
    rms_norm_eps: float = 1e-6
    initializer_range: float = 0.02
    hidden_act: str = "silu"
    attention_dropout: float = 0.0
    mlp_bias: bool = False
    attention_bias: bool = False
    rope_theta: float = 10000.0


# ---------------------------------------------------------------------------
# Helpers
# ---------------------------------------------------------------------------
def _ceil_to(x, m):
    return -(-x // m) * m


def _pick_tile(dim, candidates):
    """Largest candidate that evenly divides `dim`; otherwise the full dim
    (a block equal to the full array dim is always legal)."""
    for c in candidates:
        if dim >= c and dim % c == 0:
            return c
    return dim


def _row_tile(M, preferred=256):
    """MXU-friendly row tile: 256 for large M (M gets padded to a multiple),
    otherwise the whole (8-aligned) row count - never a huge full-M block."""
    if M >= preferred:
        return preferred
    return _ceil_to(max(M, 1), 8)


def _pad_rows(x, rows):
    if x.shape[0] == rows:
        return x
    return jnp.pad(x, ((0, rows - x.shape[0]), (0, 0)))


# ---------------------------------------------------------------------------
# RMSNorm kernel
# ---------------------------------------------------------------------------
def _rmsnorm_kernel(x_ref, w_ref, o_ref, *, eps):
    x = x_ref[...].astype(jnp.float32)
    var = jnp.mean(x * x, axis=-1, keepdims=True)
    normed = (x * jax.lax.rsqrt(var + eps)).astype(o_ref.dtype)
    o_ref[...] = normed * w_ref[...]


def llama_rmsnorm(x, weight, eps=1e-6, row_tile=None,
                  vmem_budget_bytes=16 * 1024 * 1024):
    """RMSNorm over the last axis. x: (..., H), weight: (H,)."""
    orig_shape = x.shape
    H = orig_shape[-1]
    x2d = x.reshape(-1, H)
    R = x2d.shape[0]
    itemsize = x2d.dtype.itemsize

    if row_tile is None:
        # 2 buffers x (input + output) blocks must fit the budget.
        rt = vmem_budget_bytes // (4 * H * itemsize)
        row_tile = max(8, min((rt // 8) * 8, 1024))
    if R <= row_tile:
        row_tile, R_pad = R, R          # full-array block: always legal
    else:
        R_pad = _ceil_to(R, row_tile)
    x2d = _pad_rows(x2d, R_pad)

    # Tiny constant weight: untiled, fully VMEM-resident, pre-cast once.
    w2d = weight.reshape(1, H).astype(x.dtype)

    out = pl.pallas_call(
        functools.partial(_rmsnorm_kernel, eps=eps),
        out_shape=jax.ShapeDtypeStruct((R_pad, H), x.dtype),
        grid=(R_pad // row_tile,),
        in_specs=[
            pl.BlockSpec((row_tile, H), lambda i: (i, 0)),
            pl.BlockSpec(memory_space=pltpu.MemorySpace.VMEM),
        ],
        out_specs=pl.BlockSpec((row_tile, H), lambda i: (i, 0)),
        compiler_params=pltpu.CompilerParams(
            dimension_semantics=("parallel",),
            vmem_limit_bytes=_VMEM_LIMIT_BYTES,
        ),
        cost_estimate=pl.CostEstimate(
            flops=int(3 * R * H),
            transcendentals=int(R),
            bytes_accessed=int(2 * R * H * itemsize + H * itemsize)),
    )(x2d, w2d)

    if R_pad != R:
        out = out[:R]
    return out.reshape(orig_shape)


# ---------------------------------------------------------------------------
# Matmul kernels (plain / +residual epilogue / fused gate-up + SwiGLU epilogue)
# ---------------------------------------------------------------------------
def _matmul_kernel(a_ref, b_ref, o_ref, acc_ref):
    @pl.when(pl.program_id(2) == 0)
    def _():
        acc_ref[...] = jnp.zeros(acc_ref.shape, acc_ref.dtype)

    acc_ref[...] += jnp.dot(a_ref[...], b_ref[...],
                            preferred_element_type=jnp.float32)

    @pl.when(pl.program_id(2) == pl.num_programs(2) - 1)
    def _():
        o_ref[...] = acc_ref[...].astype(o_ref.dtype)


def _matmul_residual_kernel(a_ref, b_ref, r_ref, o_ref, acc_ref):
    @pl.when(pl.program_id(2) == 0)
    def _():
        acc_ref[...] = jnp.zeros(acc_ref.shape, acc_ref.dtype)

    acc_ref[...] += jnp.dot(a_ref[...], b_ref[...],
                            preferred_element_type=jnp.float32)

    @pl.when(pl.program_id(2) == pl.num_programs(2) - 1)
    def _():
        # Residual add fused into the epilogue (no extra HBM pass).
        o_ref[...] = (acc_ref[...] +
                      r_ref[...].astype(jnp.float32)).astype(o_ref.dtype)


def _gate_up_swiglu_kernel(a_ref, g_ref, u_ref, o_ref, accg_ref, accu_ref):
    @pl.when(pl.program_id(2) == 0)
    def _():
        accg_ref[...] = jnp.zeros(accg_ref.shape, accg_ref.dtype)
        accu_ref[...] = jnp.zeros(accu_ref.shape, accu_ref.dtype)

    a = a_ref[...]                       # shared A block -> x read once
    accg_ref[...] += jnp.dot(a, g_ref[...], preferred_element_type=jnp.float32)
    accu_ref[...] += jnp.dot(a, u_ref[...], preferred_element_type=jnp.float32)

    @pl.when(pl.program_id(2) == pl.num_programs(2) - 1)
    def _():
        g = accg_ref[...]
        sig = 1.0 / (1.0 + jnp.exp(-g))  # silu(g) = g * sigmoid(g)
        o_ref[...] = (g * sig * accu_ref[...]).astype(o_ref.dtype)


def _matmul_call(kernel, a, weight_ops, row_ops, N, n_acc, flops):
    """Generic tiled launcher: a:(M,K); weight_ops are (K,N) operands blocked
    over (k, j); row_ops are (M,N) epilogue operands blocked over (i, j)."""
    M, K = a.shape
    tm = _row_tile(M)
    tn = _pick_tile(N, (512, 256, 128))
    tk = _pick_tile(K, (1024, 512, 256, 128))
    M_pad = _ceil_to(M, tm)
    grid = (M_pad // tm, N // tn, K // tk)

    in_specs = [pl.BlockSpec((tm, tk), lambda i, j, k: (i, k))]
    inputs = [_pad_rows(a, M_pad)]
    for w in weight_ops:
        in_specs.append(pl.BlockSpec((tk, tn), lambda i, j, k: (k, j)))
        inputs.append(w)
    for r in row_ops:
        in_specs.append(pl.BlockSpec((tm, tn), lambda i, j, k: (i, j)))
        inputs.append(_pad_rows(r, M_pad))

    out = pl.pallas_call(
        kernel,
        out_shape=jax.ShapeDtypeStruct((M_pad, N), a.dtype),
        grid=grid,
        in_specs=in_specs,
        out_specs=pl.BlockSpec((tm, tn), lambda i, j, k: (i, j)),
        scratch_shapes=[pltpu.VMEM((tm, tn), jnp.float32)] * n_acc,
        compiler_params=pltpu.CompilerParams(
            dimension_semantics=("parallel", "parallel", "arbitrary"),
            vmem_limit_bytes=_VMEM_LIMIT_BYTES),
        cost_estimate=pl.CostEstimate(
            flops=int(flops),
            transcendentals=0,
            bytes_accessed=int(
                (M * K + sum(int(w.size) for w in weight_ops)
                 + (1 + len(row_ops)) * M * N) * a.dtype.itemsize)),
    )(*inputs)
    return out[:M] if M_pad != M else out


def pallas_matmul(a, b):
    M, K = a.shape
    N = b.shape[1]
    return _matmul_call(_matmul_kernel, a, [b], [], N, 1, 2 * M * N * K)


def pallas_matmul_residual(a, b, residual):
    M, K = a.shape
    N = b.shape[1]
    return _matmul_call(_matmul_residual_kernel, a, [b], [residual], N, 1,
                        2 * M * N * K)


def pallas_gate_up_swiglu(x, wg, wu):
    M, K = x.shape
    N = wg.shape[1]
    return _matmul_call(_gate_up_swiglu_kernel, x, [wg, wu], [], N, 2,
                        4 * M * N * K)


# ---------------------------------------------------------------------------
# Flash attention kernel: in-kernel RoPE, GQA via index_map, no transposes.
# ---------------------------------------------------------------------------
def _flash_attn_kernel(q_ref, k_ref, v_ref, cq_ref, sq_ref, ck_ref, sk_ref,
                       o_ref, qr_sc, m_sc, l_sc, acc_sc, *, half):
    kv = pl.program_id(3)

    @pl.when(kv == 0)
    def _():
        # RoPE on the q tile once per (b, h, q-tile); attention scaling and the
        # rotate_half sign are pre-folded into cq/sq on the host.
        q = q_ref[...]
        qr_sc[...] = q * cq_ref[...] + pltpu.roll(q, shift=half, axis=1) * sq_ref[...]
        m_sc[...] = jnp.full(m_sc.shape, -jnp.inf, m_sc.dtype)
        l_sc[...] = jnp.zeros(l_sc.shape, l_sc.dtype)
        acc_sc[...] = jnp.zeros(acc_sc.shape, acc_sc.dtype)

    # RoPE on the current k tile (native dtype; rotate via the XLU roll slot).
    k = k_ref[...]
    k = k * ck_ref[...] + pltpu.roll(k, shift=half, axis=1) * sk_ref[...]

    # Native-dtype operands (bf16 fast path on real models), f32 accumulation.
    s = jax.lax.dot_general(qr_sc[...], k, (((1,), (1,)), ((), ())),
                            preferred_element_type=jnp.float32)

    m_prev = m_sc[...]
    m_new = jnp.maximum(m_prev, jnp.max(s, axis=-1, keepdims=True))
    alpha = jnp.exp(m_prev - m_new)
    p = jnp.exp(s - m_new)
    l_sc[...] = alpha * l_sc[...] + jnp.sum(p, axis=-1, keepdims=True)
    acc_sc[...] = alpha * acc_sc[...] + jnp.dot(
        p.astype(v_ref.dtype), v_ref[...], preferred_element_type=jnp.float32)
    m_sc[...] = m_new

    @pl.when(kv == pl.num_programs(3) - 1)
    def _():
        o_ref[...] = (acc_sc[...] *
                      pl.reciprocal(l_sc[...], approx=True)).astype(o_ref.dtype)


def pallas_attention(qkv, cos_q, sin_q, cos_k, sin_k, *, B, S, nH, nKV, hd):
    """qkv: (B*S, (nH + 2*nKV) * hd) fused projection slab.
    RoPE tables: (B*S, 1, hd).  Returns the (B*S, nH*hd) attention output slab
    (already in the (B, S, nH, hd) layout the o-projection consumes)."""
    n_rep = nH // nKV
    assert hd % 128 == 0, "head_dim must be a multiple of 128 (lane-dense blocks)"
    tq = _pick_tile(S, (256, 128, 8))
    tk = _pick_tile(S, (512, 256, 128, 8))
    half = hd // 2
    grid = (B, nH, S // tq, S // tk)

    # q/k/v are column slices of the fused qkv slab; GQA -> K/V use h // n_rep.
    q_spec = pl.BlockSpec((tq, hd), lambda b, h, qi, ki: (b * (S // tq) + qi, h))
    k_spec = pl.BlockSpec(
        (tk, hd), lambda b, h, qi, ki: (b * (S // tk) + ki, nH + h // n_rep))
    v_spec = pl.BlockSpec(
        (tk, hd), lambda b, h, qi, ki: (b * (S // tk) + ki, nH + nKV + h // n_rep))
    # The reference RoPE broadcast (unsqueeze_dim=2 on (B, heads, S, D)) indexes
    # cos/sin by the HEAD index, so a single (1, hd) row per (b, head) tile.
    ropeq_spec = pl.BlockSpec((None, 1, hd), lambda b, h, qi, ki: (b * S + h, 0, 0))
    ropek_spec = pl.BlockSpec((None, 1, hd),
                              lambda b, h, qi, ki: (b * S + h // n_rep, 0, 0))
    out_spec = pl.BlockSpec((tq, hd), lambda b, h, qi, ki: (b * (S // tq) + qi, h))

    return pl.pallas_call(
        functools.partial(_flash_attn_kernel, half=half),
        out_shape=jax.ShapeDtypeStruct((B * S, nH * hd), qkv.dtype),
        grid=grid,
        in_specs=[q_spec, k_spec, v_spec,
                  ropeq_spec, ropeq_spec, ropek_spec, ropek_spec],
        out_specs=out_spec,
        scratch_shapes=[pltpu.VMEM((tq, hd), qkv.dtype),     # roped q tile
                        pltpu.VMEM((tq, 1), jnp.float32),    # running max
                        pltpu.VMEM((tq, 1), jnp.float32),    # running denom
                        pltpu.VMEM((tq, hd), jnp.float32)],  # output acc
        compiler_params=pltpu.CompilerParams(
            dimension_semantics=("parallel", "parallel", "parallel", "arbitrary"),
            vmem_limit_bytes=_VMEM_LIMIT_BYTES),
        cost_estimate=pl.CostEstimate(
            flops=int(4 * B * nH * S * S * hd),
            transcendentals=int(B * nH * S * S),
            bytes_accessed=int((qkv.size + B * S * nH * hd) * qkv.dtype.itemsize)),
    )(qkv, qkv, qkv, cos_q, sin_q, cos_k, sin_k)


# ---------------------------------------------------------------------------
# RoPE tables (host precompute; tiny)
# ---------------------------------------------------------------------------
def rotary_tables(position_ids, head_dim, dtype, base, scale):
    """Returns (cos_q, sin_q, cos_k, sin_k), each (B*S, 1, head_dim).
    rotate_half's sign is folded into sin; the attention scale is folded into
    the q-side tables so the kernel never rescales the score tile."""
    B, S = position_ids.shape
    half = head_dim // 2
    inv_freq = 1.0 / (base ** (jnp.arange(0, head_dim, 2, dtype=jnp.float32)
                               / head_dim))
    freqs = position_ids.astype(jnp.float32)[:, :, None] * inv_freq[None, None, :]
    emb = jnp.concatenate([freqs, freqs], axis=-1)           # (B, S, hd)
    cos = jnp.cos(emb)
    sin = jnp.sin(emb)
    sin_signed = jnp.concatenate([-sin[..., :half], sin[..., half:]], axis=-1)

    def flat(t):
        return t.astype(dtype).reshape(B * S, 1, head_dim)

    return (flat(cos * scale), flat(sin_signed * scale),
            flat(cos), flat(sin_signed))


# ---------------------------------------------------------------------------
# Full LlamaModel forward (Pallas kernels + XLA glue)
# ---------------------------------------------------------------------------
def llama_forward(params, input_ids, cfg, attention_mask=None, position_ids=None):
    B, S = input_ids.shape
    H = cfg.hidden_size
    nH = cfg.num_attention_heads
    nKV = cfg.num_key_value_heads
    hd = H // nH
    scale = hd ** -0.5
    eps = cfg.rms_norm_eps

    if attention_mask is not None:
        # TODO(synk): additive attention_mask is not plumbed into the attention
        # kernel (the reference forward is exercised with None).
        raise NotImplementedError("attention_mask is not supported")

    # The reference applies RoPE with unsqueeze_dim=2 to (B, heads, S, D)
    # tensors, which only broadcasts when heads == seq_len; mirror that.
    assert nH == S and nKV == S, "reference RoPE broadcast requires heads == seq_len"

    # TODO(synk): token-embedding gather stays in XLA (data-dependent gather).
    h = jnp.take(params["embed"], input_ids, axis=0)

    if position_ids is None:
        position_ids = jnp.broadcast_to(jnp.arange(S)[None, :], (B, S))
    cos_q, sin_q, cos_k, sin_k = rotary_tables(position_ids, hd, h.dtype,
                                               cfg.rope_theta, scale)

    for lp in params["layers"]:
        # ---- self-attention block ----
        residual = h.reshape(B * S, H)
        x2 = llama_rmsnorm(h, lp["input_ln"], eps=eps).reshape(B * S, H)
        qkv = pallas_matmul(x2, lp["wqkv"])                  # fused q|k|v
        o_slab = pallas_attention(qkv, cos_q, sin_q, cos_k, sin_k,
                                  B=B, S=S, nH=nH, nKV=nKV, hd=hd)
        h = pallas_matmul_residual(o_slab, lp["wo"], residual).reshape(B, S, H)
        # attention_dropout == 0.0 -> identity (skipped)

        # ---- MLP block ----
        residual = h.reshape(B * S, H)
        x2 = llama_rmsnorm(h, lp["post_ln"], eps=eps).reshape(B * S, H)
        mid = pallas_gate_up_swiglu(x2, lp["wg"], lp["wu"])  # fused + SwiGLU
        h = pallas_matmul_residual(mid, lp["wd"], residual).reshape(B, S, H)

    return llama_rmsnorm(h, params["final_norm"], eps=eps)


# ---------------------------------------------------------------------------
# Parameter init (deterministic, small-scale); q|k|v pre-fused
# ---------------------------------------------------------------------------
def init_params(cfg, key, dtype=jnp.float32):
    hd = cfg.hidden_size // cfg.num_attention_heads
    keys = iter(jax.random.split(key, 1 + 5 * cfg.num_hidden_layers))

    def dense(k, fan_in, fan_out):
        return jax.random.normal(k, (fan_in, fan_out), dtype) * cfg.initializer_range

    params = {
        "embed": jax.random.normal(next(keys), (cfg.vocab_size, cfg.hidden_size),
                                   dtype) * cfg.initializer_range,
        "final_norm": jnp.ones((cfg.hidden_size,), dtype),
        "layers": [],
    }
    qkv_out = (cfg.num_attention_heads + 2 * cfg.num_key_value_heads) * hd
    for _ in range(cfg.num_hidden_layers):
        params["layers"].append({
            "wqkv": dense(next(keys), cfg.hidden_size, qkv_out),
            "wo": dense(next(keys), cfg.num_attention_heads * hd, cfg.hidden_size),
            "wg": dense(next(keys), cfg.hidden_size, cfg.intermediate_size),
            "wu": dense(next(keys), cfg.hidden_size, cfg.intermediate_size),
            "wd": dense(next(keys), cfg.intermediate_size, cfg.hidden_size),
            "input_ln": jnp.ones((cfg.hidden_size,), dtype),
            "post_ln": jnp.ones((cfg.hidden_size,), dtype),
        })
    return params


# ---------------------------------------------------------------------------
# Pure-XLA reference (same math as the PyTorch module)
# ---------------------------------------------------------------------------
def rotate_half(x):
    half = x.shape[-1] // 2
    return jnp.concatenate([-x[..., half:], x[..., :half]], axis=-1)


def apply_rotary_pos_emb(q, k, cos, sin, unsqueeze_dim=2):
    cos = jnp.expand_dims(cos, unsqueeze_dim)
    sin = jnp.expand_dims(sin, unsqueeze_dim)
    return q * cos + rotate_half(q) * sin, k * cos + rotate_half(k) * sin


def repeat_kv(x, n_rep):
    if n_rep == 1:
        return x
    b, kvh, s, d = x.shape
    x = jnp.broadcast_to(x[:, :, None, :, :], (b, kvh, n_rep, s, d))
    return x.reshape(b, kvh * n_rep, s, d)


def ref_forward(params, input_ids, cfg):
    hp = jax.lax.Precision.HIGHEST
    B, S = input_ids.shape
    H = cfg.hidden_size
    nH = cfg.num_attention_heads
    nKV = cfg.num_key_value_heads
    hd = H // nH
    n_rep = nH // nKV
    scale = hd ** -0.5
    eps = cfg.rms_norm_eps

    def rmsnorm(x, w):
        xf = x.astype(jnp.float32)
        var = jnp.mean(xf * xf, axis=-1, keepdims=True)
        return w.astype(x.dtype) * (xf * jax.lax.rsqrt(var + eps)).astype(x.dtype)

    h = jnp.take(params["embed"], input_ids, axis=0)
    position_ids = jnp.broadcast_to(jnp.arange(S)[None, :], (B, S))
    inv_freq = 1.0 / (cfg.rope_theta ** (jnp.arange(0, hd, 2, dtype=jnp.float32) / hd))
    freqs = position_ids.astype(jnp.float32)[:, :, None] * inv_freq[None, None, :]
    emb = jnp.concatenate([freqs, freqs], axis=-1)
    cos, sin = jnp.cos(emb).astype(h.dtype), jnp.sin(emb).astype(h.dtype)

    for lp in params["layers"]:
        wq = lp["wqkv"][:, :nH * hd]
        wk = lp["wqkv"][:, nH * hd:(nH + nKV) * hd]
        wv = lp["wqkv"][:, (nH + nKV) * hd:]

        residual = h
        x = rmsnorm(h, lp["input_ln"]).reshape(B * S, H)
        q = jnp.dot(x, wq, precision=hp).reshape(B, S, nH, hd).transpose(0, 2, 1, 3)
        k = jnp.dot(x, wk, precision=hp).reshape(B, S, nKV, hd).transpose(0, 2, 1, 3)
        v = jnp.dot(x, wv, precision=hp).reshape(B, S, nKV, hd).transpose(0, 2, 1, 3)
        q, k = apply_rotary_pos_emb(q, k, cos, sin, unsqueeze_dim=2)
        k = repeat_kv(k, n_rep)
        v = repeat_kv(v, n_rep)
        attn = jnp.einsum("bhqd,bhkd->bhqk", q, k, precision=hp) * scale
        probs = jax.nn.softmax(attn, axis=-1)
        o = jnp.einsum("bhqk,bhkd->bhqd", probs, v, precision=hp)
        o = o.transpose(0, 2, 1, 3).reshape(B * S, nH * hd)
        h = residual + jnp.dot(o, lp["wo"], precision=hp).reshape(B, S, H)

        residual = h
        x = rmsnorm(h, lp["post_ln"]).reshape(B * S, H)
        g = jnp.dot(x, lp["wg"], precision=hp)
        u = jnp.dot(x, lp["wu"], precision=hp)
        mid = jax.nn.silu(g) * u
        h = residual + jnp.dot(mid, lp["wd"], precision=hp).reshape(B, S, H)

    return rmsnorm(h, params["final_norm"])


# ---------------------------------------------------------------------------
# Main
# ---------------------------------------------------------------------------
if __name__ == "__main__":
    # NOTE: the reference module's RoPE broadcast (unsqueeze_dim=2 applied after
    # transposing q/k to (B, heads, S, D)) is only well-defined when
    # num_attention_heads == seq_len; the test shapes honour that.  head_dim is
    # 128 (the real Llama value) so the attention blocks are lane-dense.
    cfg = LlamaConfig(
        vocab_size=256,
        hidden_size=1024,            # 8 heads * head_dim 128
        intermediate_size=2048,
        num_hidden_layers=2,
        num_attention_heads=8,
        num_key_value_heads=8,
        max_position_embeddings=32,
        rms_norm_eps=1e-6,
    )
    batch, seq = 2, 8

    key = jax.random.PRNGKey(0)
    k_param, k_ids = jax.random.split(key)
    params = init_params(cfg, k_param, dtype=jnp.float32)
    input_ids = jax.random.randint(k_ids, (batch, seq), 0, cfg.vocab_size)

    y = llama_forward(params, input_ids, cfg)
    jax.block_until_ready(y)

    y_ref = ref_forward(params, input_ids, cfg)
    assert y.shape == (batch, seq, cfg.hidden_size)
    err = float(jnp.max(jnp.abs(y - y_ref)))
    # Tolerance covers MXU f32 matmul precision across generations plus the
    # approx-reciprocal epilogue; real bugs produce O(1) errors here.
    assert err < 5e-2, f"max abs error {err}"

    print("KERNEL_OK")
</pallas_src>

<mosaic_0001>
module attributes {stable_mosaic.version = 11 : i64} {
  func.func @_rmsnorm_kernel(%arg0: i32, %arg1: memref<16x1024xf32, #tpu.memory_space<vmem>>, %arg2: memref<1x1024xf32, #tpu.memory_space<vmem>>, %arg3: memref<16x1024xf32, #tpu.memory_space<vmem>>) attributes {dimension_semantics = [#tpu.dimension_semantics<parallel>], iteration_bounds = array<i64: 1>, scalar_prefetch = 0 : i64, scratch_operands = 0 : i64, tpu.core_type = #tpu.core_type<tc>, window_params = [{transform_indices = @transform_0, window_bounds = array<i64: 16, 1024>}, {pipeline_mode = #tpu.pipeline_mode<synchronous>, transform_indices = @transform_1, window_bounds = array<i64: 1, 1024>}, {transform_indices = @transform_2, window_bounds = array<i64: 16, 1024>}]} {
    %c0 = arith.constant 0 : index
    %c0_0 = arith.constant 0 : index
    %0 = vector.load %arg1[%c0, %c0_0] : memref<16x1024xf32, #tpu.memory_space<vmem>>, vector<16x1024xf32>
    %1 = arith.mulf %0, %0 : vector<16x1024xf32>
    %cst = arith.constant dense<0.000000e+00> : vector<16xf32>
    %2 = vector.multi_reduction <add>, %1, %cst [1] : vector<16x1024xf32> to vector<16xf32>
    %3 = vector.shape_cast %2 : vector<16xf32> to vector<16x1xf32>
    %cst_1 = arith.constant 1.024000e+03 : f32
    %4 = vector.broadcast %cst_1 : f32 to vector<16x1xf32>
    %5 = arith.divf %3, %4 : vector<16x1xf32>
    %cst_2 = arith.constant 9.99999997E-7 : f32
    %6 = vector.broadcast %cst_2 : f32 to vector<16x1xf32>
    %7 = arith.addf %5, %6 : vector<16x1xf32>
    %8 = math.rsqrt %7 : vector<16x1xf32>
    %9 = vector.broadcast %8 : vector<16x1xf32> to vector<16x1024xf32>
    %10 = arith.mulf %0, %9 : vector<16x1024xf32>
    %c0_3 = arith.constant 0 : index
    %c0_4 = arith.constant 0 : index
    %11 = vector.load %arg2[%c0_3, %c0_4] : memref<1x1024xf32, #tpu.memory_space<vmem>>, vector<1x1024xf32>
    %12 = vector.broadcast %11 : vector<1x1024xf32> to vector<16x1024xf32>
    %13 = arith.mulf %10, %12 : vector<16x1024xf32>
    %c0_5 = arith.constant 0 : index
    %c0_6 = arith.constant 0 : index
    %14 = vector.load %arg3[%c0_5, %c0_6] : memref<16x1024xf32, #tpu.memory_space<vmem>>, vector<16x1024xf32>
    tpu.vector_store %arg3[%c0_5, %c0_6], %13 {strides = array<i32>} : memref<16x1024xf32, #tpu.memory_space<vmem>>, vector<16x1024xf32>,
    return
  }
  func.func @transform_0(%arg0: i32) -> (i32, i32) {
    %c0_i32 = arith.constant 0 : i32
    %c0_i32_0 = arith.constant 0 : i32
    return %arg0, %c0_i32 : i32, i32
  }
  func.func @transform_1(%arg0: i32) -> (i32, i32) {
    %c0_i32 = arith.constant 0 : i32
    %c0_i32_0 = arith.constant 0 : i32
    %c0_i32_1 = arith.constant 0 : i32
    return %c0_i32, %c0_i32_0 : i32, i32
  }
  func.func @transform_2(%arg0: i32) -> (i32, i32) {
    %c0_i32 = arith.constant 0 : i32
    %c0_i32_0 = arith.constant 0 : i32
    return %arg0, %c0_i32 : i32, i32
  }
}

</mosaic_0001>

<llo_original>
// kernel: tpu_custom_call.1
$region0: #{tpu_custom_call.1}
  #allocation0 [shape = 'u32[]', space=smem, size = 0x4, offset = 0x4, fixed_abs, tag = 'smem constant byte address 0x4 - core index']
  #allocation1 [shape = 'u32[144,128]{1,0:T(1,128)}', space=vmem, size = 0x12000, scoped, tag = 'internal scratch']
  %s0 = inlined_call_operand.hbm [shape: f32[16,1024], index: 0, kind: input, shape index: {}]
  %s1 = inlined_call_operand.hbm [shape: f32[1,1024], index: 1, kind: input, shape index: {}]
  %s2 = inlined_call_operand.hbm [shape: f32[16,1024], index: 2, kind: output, shape index: {}]
  %s3 = sld [smem:[#allocation0]]
  $region26: #{tpu_custom_call.1} parent=0
    _
  %s5 = ssub.s32 1, %s3
  %s6 = scalar_select 0, %s5, %s3
  $region1: #{tpu_custom_call.1} parent=0
    #allocation2 [shape = 'u8[65536]{0}', space=vmem, size = 0x10000, scoped, tag = 'input window, operand 0, single buffered']
    #allocation3 [shape = 's32[1]{0}', space=sflag, size = 0x4, scoped, tag = 'scoped memory for tpu_custom_call.1']
    #allocation4 [shape = 's32[1]{0}', space=sflag, size = 0x4, scoped, tag = 'scoped memory for tpu_custom_call.1']
    #allocation5 [shape = 'u8[4096]{0}', space=vmem, size = 0x1000, scoped, tag = 'input window, operand 1, single buffered']
    #allocation6 [shape = 's32[1]{0}', space=sflag, size = 0x4, scoped, tag = 'scoped memory for tpu_custom_call.1']
    #allocation7 [shape = 'u8[65536]{0}', space=vmem, size = 0x10000, scoped, tag = 'output window, operand 0, single buffered']
    %7 = vsyncpa [#allocation3], 0
    %8 = vsyncpa [#allocation6], 0
    %9 = vsyncpa [#allocation4], 0
    // Predicated region
    $region2: #{tpu_custom_call.1} parent=1 // pred_check
      _
    $region3: #{tpu_custom_call.1} parent=1 // pred_check_branch
      %11 = sbr.rel (0) target = $region5
    $region4: #{tpu_custom_call.1} parent=1 // pred_region
      %s13 = ssub.s32 2048, 2048
      %14 = vsyncadd [#allocation3], %s13
      %s15 = sshll.u32 [#allocation2], 4
      %s16 = int_to_ptr.vmem [resolvable:$true] %s15
      %21 = dma.hbm_to_vmem [thread:$0]  %s0, 2048, %s16, [#allocation3], 1024, 1024, 64
    $region5: #{tpu_custom_call.1} parent=1 // pred_fallthru
      _
    // Predicated region
    $region6: #{tpu_custom_call.1} parent=1 // pred_check
      _
    $region7: #{tpu_custom_call.1} parent=1 // pred_check_branch
      %23 = sbr.rel (0) target = $region9
    $region8: #{tpu_custom_call.1} parent=1 // pred_region
      %s25 = ssub.s32 128, 128
      %26 = vsyncadd [#allocation6], %s25
      %s28 = sshll.u32 [#allocation5], 4
      %s29 = int_to_ptr.vmem [resolvable:$true] %s28
      %31 = dma.hbm_to_vmem [thread:$0]  %s1, 128, %s29, [#allocation6]
    $region9: #{tpu_custom_call.1} parent=1 // pred_fallthru
      _
    // Predicated region
    $region10: #{tpu_custom_call.1} parent=1 // pred_check
      _
    $region11: #{tpu_custom_call.1} parent=1 // pred_check_branch
      %33 = sbr.rel (0) target = $region13
    $region12: #{tpu_custom_call.1} parent=1 // pred_region
      %34 = dma.done [#allocation3], 2048
    $region13: #{tpu_custom_call.1} parent=1 // pred_fallthru
      _
    // Predicated region
    $region14: #{tpu_custom_call.1} parent=1 // pred_check
      _
    $region15: #{tpu_custom_call.1} parent=1 // pred_check_branch
      %36 = sbr.rel (0) target = $region17
    $region16: #{tpu_custom_call.1} parent=1 // pred_region
      %37 = dma.done [#allocation6], 128
    $region17: #{tpu_custom_call.1} parent=1 // pred_fallthru
      _
    %v38 = vld [vmem:[#allocation2] sm:$0xff]
    %v39 = vld [vmem:[#allocation2 + $0x8] sm:$0xff]
    %v40 = vld [vmem:[#allocation2 + $0x10] sm:$0xff]
    %v41 = vld [vmem:[#allocation2 + $0x18] sm:$0xff]
    %v42 = vld [vmem:[#allocation2 + $0x20] sm:$0xff]
    %v43 = vld [vmem:[#allocation2 + $0x28] sm:$0xff]
    %v44 = vld [vmem:[#allocation2 + $0x30] sm:$0xff]
    %v45 = vld [vmem:[#allocation2 + $0x38] sm:$0xff]
    %v46 = vld [vmem:[#allocation2 + $0x40] sm:$0xff]
    %v47 = vld [vmem:[#allocation2 + $0x48] sm:$0xff]
    %v48 = vld [vmem:[#allocation2 + $0x50] sm:$0xff]
    %v49 = vld [vmem:[#allocation2 + $0x58] sm:$0xff]
    %v50 = vld [vmem:[#allocation2 + $0x60] sm:$0xff]
    %v51 = vld [vmem:[#allocation2 + $0x68] sm:$0xff]
    %v52 = vld [vmem:[#allocation2 + $0x70] sm:$0xff]
    %v53 = vld [vmem:[#allocation2 + $0x78] sm:$0xff]
    %v54 = vmul.f32 %v38, %v38
    %v55 = vmul.f32 %v39, %v39
    %v56 = vmul.f32 %v40, %v40
    %v57 = vmul.f32 %v41, %v41
    %v58 = vmul.f32 %v42, %v42
    %v59 = vmul.f32 %v43, %v43
    %v60 = vmul.f32 %v44, %v44
    %v61 = vmul.f32 %v45, %v45
    %v62 = vmul.f32 %v46, %v46
    %v63 = vmul.f32 %v47, %v47
    %v64 = vmul.f32 %v48, %v48
    %v65 = vmul.f32 %v49, %v49
    %v66 = vmul.f32 %v50, %v50
    %v67 = vmul.f32 %v51, %v51
    %v68 = vmul.f32 %v52, %v52
    %v69 = vmul.f32 %v53, %v53
    %v70 = vadd.f32 %v54, %v55
    %v71 = vadd.f32 %v70, %v56
    %v72 = vadd.f32 %v71, %v57
    %v73 = vadd.f32 %v72, %v58
    %v74 = vadd.f32 %v73, %v59
    %v75 = vadd.f32 %v74, %v60
    %v76 = vadd.f32 %v75, %v61
    %77 = vadd.xlane.f32.xlu0 %v76
    %v78 = vpop.xlane.xlu0 %77
    %v79 = vadd.f32 %v62, %v63
    %v80 = vadd.f32 %v79, %v64
    %v81 = vadd.f32 %v80, %v65
    %v82 = vadd.f32 %v81, %v66
    %v83 = vadd.f32 %v82, %v67
    %v84 = vadd.f32 %v83, %v68
    %v85 = vadd.f32 %v84, %v69
    %86 = vadd.xlane.f32.xlu0 %v85
    %v87 = vpop.xlane.xlu0 %86
    %v88 = vrcp.pop 1024.0
    %v89 = vmul.f32 %v78, %v88
    %v90 = vmul.f32 %v87, %v88
    %v91 = vadd.f32 %v89, 1e-06
    %v92 = vadd.f32 %v90, 1e-06
    %v93 = vrsqrt.pop %v91
    %v94 = vrsqrt.pop %v92
    %v95 = vmul.f32 %v38, %v93
    %v96 = vmul.f32 %v39, %v93
    %v97 = vmul.f32 %v40, %v93
    %v98 = vmul.f32 %v41, %v93
    %v99 = vmul.f32 %v42, %v93
    %v100 = vmul.f32 %v43, %v93
    %v101 = vmul.f32 %v44, %v93
    %v102 = vmul.f32 %v45, %v93
    %v103 = vmul.f32 %v46, %v94
    %v104 = vmul.f32 %v47, %v94
    %v105 = vmul.f32 %v48, %v94
    %v106 = vmul.f32 %v49, %v94
    %v107 = vmul.f32 %v50, %v94
    %v108 = vmul.f32 %v51, %v94
    %v109 = vmul.f32 %v52, %v94
    %v110 = vmul.f32 %v53, %v94
    %v111 = vld [vmem:[#allocation5] sm:$0xff]
    %v113 = vlaneseq
    %v114 = vshrl.u32 %v113, 7
    %v115 = vsub.s32 0, %v114
    %v116 = vrot.slane %v111, %v115
    %v117 = vlaneseq
    %v118 = vshrl.u32 %v117, 7
    %v119 = vsub.s32 1, %v118
    %v120 = vrot.slane %v111, %v119
    %v121 = vlaneseq
    %v122 = vshrl.u32 %v121, 7
    %v123 = vsub.s32 2, %v122
    %v124 = vrot.slane %v111, %v123
    %v125 = vlaneseq
    %v126 = vshrl.u32 %v125, 7
    %v127 = vsub.s32 3, %v126
    %v128 = vrot.slane %v111, %v127
    %v129 = vlaneseq
    %v130 = vshrl.u32 %v129, 7
    %v131 = vsub.s32 4, %v130
    %v132 = vrot.slane %v111, %v131
    %v133 = vlaneseq
    %v134 = vshrl.u32 %v133, 7
    %v135 = vsub.s32 5, %v134
    %v136 = vrot.slane %v111, %v135
    %v137 = vlaneseq
    %v138 = vshrl.u32 %v137, 7
    %v139 = vsub.s32 6, %v138
    %v140 = vrot.slane %v111, %v139
    %v141 = vlaneseq
    %v142 = vshrl.u32 %v141, 7
    %v143 = vsub.s32 7, %v142
    %v144 = vrot.slane %v111, %v143
    %v153 = vmul.f32 %v95, %v116
    %v154 = vmul.f32 %v96, %v120
    %v155 = vmul.f32 %v97, %v124
    %v156 = vmul.f32 %v98, %v128
    %v157 = vmul.f32 %v99, %v132
    %v158 = vmul.f32 %v100, %v136
    %v159 = vmul.f32 %v101, %v140
    %v160 = vmul.f32 %v102, %v144
    %v161 = vmul.f32 %v103, %v116
    %v162 = vmul.f32 %v104, %v120
    %v163 = vmul.f32 %v105, %v124
    %v164 = vmul.f32 %v106, %v128
    %v165 = vmul.f32 %v107, %v132
    %v166 = vmul.f32 %v108, %v136
    %v167 = vmul.f32 %v109, %v140
    %v168 = vmul.f32 %v110, %v144
    %169 = vst [vmem:[#allocation7] sm:$0xff] %v153
    %170 = vst [vmem:[#allocation7 + $0x8] sm:$0xff] %v154
    %171 = vst [vmem:[#allocation7 + $0x10] sm:$0xff] %v155
    %172 = vst [vmem:[#allocation7 + $0x18] sm:$0xff] %v156
    %173 = vst [vmem:[#allocation7 + $0x20] sm:$0xff] %v157
    %174 = vst [vmem:[#allocation7 + $0x28] sm:$0xff] %v158
    %175 = vst [vmem:[#allocation7 + $0x30] sm:$0xff] %v159
    %176 = vst [vmem:[#allocation7 + $0x38] sm:$0xff] %v160
    %177 = vst [vmem:[#allocation7 + $0x40] sm:$0xff] %v161
    %178 = vst [vmem:[#allocation7 + $0x48] sm:$0xff] %v162
    %179 = vst [vmem:[#allocation7 + $0x50] sm:$0xff] %v163
    %180 = vst [vmem:[#allocation7 + $0x58] sm:$0xff] %v164
    %181 = vst [vmem:[#allocation7 + $0x60] sm:$0xff] %v165
    %182 = vst [vmem:[#allocation7 + $0x68] sm:$0xff] %v166
    %183 = vst [vmem:[#allocation7 + $0x70] sm:$0xff] %v167
    %184 = vst [vmem:[#allocation7 + $0x78] sm:$0xff] %v168
    // Predicated region
    $region18: #{tpu_custom_call.1} parent=1 // pred_check
      _
    $region19: #{tpu_custom_call.1} parent=1 // pred_check_branch
      %186 = sbr.rel (0) target = $region21
    $region20: #{tpu_custom_call.1} parent=1 // pred_region
      %s188 = ssub.s32 2048, 2048
      %189 = vsyncadd [#allocation4], %s188
      %s190 = sshll.u32 [#allocation7], 4
      %s191 = int_to_ptr.vmem [resolvable:$true] %s190
      %196 = dma.vmem_to_hbm [thread:$0]  %s191, 2048, %s2, [#allocation4], 1024, 1024, 64
    $region21: #{tpu_custom_call.1} parent=1 // pred_fallthru
      _
    // Predicated region
    $region22: #{tpu_custom_call.1} parent=1 // pred_check
      _
    $region23: #{tpu_custom_call.1} parent=1 // pred_check_branch
      %198 = sbr.rel (0) target = $region25
    $region24: #{tpu_custom_call.1} parent=1 // pred_region
      %199 = dma.done [#allocation4], 2048
    $region25: #{tpu_custom_call.1} parent=1 // pred_fallthru
      _
    %200 = vsyncpa [#allocation3], 1
    %201 = vsyncpa [#allocation6], 1
    %202 = vsyncpa [#allocation4], 1

</llo_original>
